<compile_context>
chip_gen: v7x
topology: tpu7x:2x2x1
jax: 0.10.0
libtpu: 0.0.40
codegen_flags: <defaults>
</compile_context>

<pallas_src>
import math

import jax
import jax.numpy as jnp
from jax.experimental import pallas as pl
from jax.experimental.pallas import tpu as pltpu

_LN2 = math.log(2.0)


def _ceil_to(x: int, m: int) -> int:
    return ((x + m - 1) // m) * m


def _pick_lane(total: int):
    """Largest-preferred lane (multiple of 128) that divides `total`."""
    for cand in (512, 1024, 2048, 384, 256, 128):
        if total % cand == 0:
            return cand
    return None


def _row_cap(lane: int, max_block_bytes: int) -> int:
    """Max block rows so an f32 block stays under max_block_bytes."""
    return max(8, (max_block_bytes // (lane * 4)) // 8 * 8)


def _pick_block_rows(rows: int, cap: int):
    """block_rows that divides `rows` (or equals it); None -> pad fallback."""
    if rows <= cap:
        return rows  # single full-dim block (allowed even if not %8)
    lo = max(8, min(256, cap // 4))  # avoid pathologically tiny blocks
    m = (cap // 8) * 8
    while m >= lo:
        if rows % m == 0:
            return m
        m -= 8
    return None


def adversarial_loss(logits, target, *, max_block_bytes=2 << 20):
    """Mean BCE(sigmoid(logits), target) (standard GAN adversarial loss).

    `target` may be an array with the same shape as `logits`, or a Python
    float/int constant real/fake label (halves HBM traffic).
    """
    total = int(math.prod(logits.shape))
    assert total > 0

    scalar_target = isinstance(target, (bool, int, float))
    if not scalar_target:
        assert target.shape == logits.shape, (target.shape, logits.shape)

    pad = 0
    x2d = t2d = None
    block_rows = None

    # --- Zero-copy path: lane-aligned reshape is a bitcast (no HBM copy). ---
    lane = _pick_lane(total)
    if lane is not None:
        rows = total // lane
        cap = _row_cap(lane, max_block_bytes)
        block_rows = _pick_block_rows(rows, cap)
        if block_rows is not None:
            x2d = logits.reshape(rows, lane)
            if not scalar_target:
                t2d = target.reshape(rows, lane)

    # --- Fallback: zero-pad the flat stream to the block grid.  Padded     ---
    # --- (x=0) elements each contribute exactly ln(2); corrected below.    ---
    if block_rows is None:
        lane = 512
        cap = _row_cap(lane, max_block_bytes)
        rows = -(-total // lane)
        if rows <= cap:
            block_rows, rows_padded = rows, rows
        else:
            block_rows = cap
            rows_padded = _ceil_to(rows, block_rows)
        pad = rows_padded * lane - total

        def _pad2d(a):
            flat = a.reshape(-1)
            if pad:
                flat = jnp.pad(flat, (0, pad))
            return flat.reshape(rows_padded, lane)

        x2d = _pad2d(logits)
        if not scalar_target:
            t2d = _pad2d(target)
        rows = rows_padded

    n_steps = rows // block_rows
    # Small resident accumulator: fold sublane groups with pure VPU adds.
    acc_rows = 8 if (block_rows % 8 == 0 and block_rows > 8) else block_rows
    groups = block_rows // acc_rows

    t_const = float(target) if scalar_target else None

    def _bce_logits(x, t):
        # Stable BCE-with-logits == binary_cross_entropy(sigmoid(x), t)
        return jnp.maximum(x, 0.0) - x * t + jnp.log1p(jnp.exp(-jnp.abs(x)))

    def _accumulate(loss, acc_ref):
        @pl.when(pl.program_id(0) == 0)
        def _():
            acc_ref[...] = jnp.zeros_like(acc_ref)

        if groups == 1:
            acc_ref[...] += loss
        else:
            acc_ref[...] += jnp.sum(
                loss.reshape(groups, acc_rows, lane), axis=0)

    if scalar_target:
        def kernel(x_ref, acc_ref):
            x = x_ref[...].astype(jnp.float32)
            _accumulate(_bce_logits(x, jnp.float32(t_const)), acc_ref)

        operands = (x2d,)
        in_specs = [pl.BlockSpec((block_rows, lane), lambda i: (i, 0))]
    else:
        def kernel(x_ref, t_ref, acc_ref):
            x = x_ref[...].astype(jnp.float32)
            t = t_ref[...].astype(jnp.float32)
            _accumulate(_bce_logits(x, t), acc_ref)

        operands = (x2d, t2d)
        in_specs = [pl.BlockSpec((block_rows, lane), lambda i: (i, 0)),
                    pl.BlockSpec((block_rows, lane), lambda i: (i, 0))]

    acc = pl.pallas_call(
        kernel,
        out_shape=jax.ShapeDtypeStruct((acc_rows, lane), jnp.float32),
        grid_spec=pltpu.PrefetchScalarGridSpec(
            num_scalar_prefetch=0,
            grid=(n_steps,),
            in_specs=in_specs,
            out_specs=pl.BlockSpec((acc_rows, lane), lambda i: (0, 0)),
        ),
        compiler_params=pltpu.CompilerParams(
            dimension_semantics=("arbitrary",),
            vmem_limit_bytes=32 << 20,
        ),
    )(*operands)

    # Tiny final reduction in XLA; subtract the padded elements' ln(2) each.
    s = jnp.sum(acc)
    if pad:
        s = s - jnp.float32(pad * _LN2)
    return (s / jnp.float32(total)).astype(jnp.float32)


def _reference(logits, target):
    # Stable oracle: -(t*log_sigmoid(x) + (1-t)*log_sigmoid(-x))
    x = logits.astype(jnp.float32)
    t = target.astype(jnp.float32)
    bce = -(t * jax.nn.log_sigmoid(x) + (1.0 - t) * jax.nn.log_sigmoid(-x))
    return jnp.mean(bce)


if __name__ == "__main__":
    key = jax.random.PRNGKey(0)
    k1, k2, k3, k4, k5 = jax.random.split(key, 5)

    # 1) Discriminator-output-like NCHW tensor + tensor target (zero-copy path).
    shape = (2, 4, 16, 16)
    logits = jax.random.normal(k1, shape, dtype=jnp.float32)
    target = (jax.random.uniform(k2, shape) > 0.5).astype(jnp.float32)
    loss = adversarial_loss(logits, target)
    jax.block_until_ready(loss)
    ref = _reference(logits, target)
    assert jnp.allclose(loss, ref, atol=1e-5, rtol=1e-5), (loss, ref)

    # 2) Constant "real" label as a Python float (single-stream kernel).
    loss_real = adversarial_loss(logits, 1.0)
    jax.block_until_ready(loss_real)
    ref_real = _reference(logits, jnp.ones_like(logits))
    assert jnp.allclose(loss_real, ref_real, atol=1e-5, rtol=1e-5), (
        loss_real, ref_real)

    # 3) Odd, non-lane-aligned shape (padded fallback + ln(2) correction).
    shape2 = (2, 3, 7, 5)
    logits2 = 3.0 * jax.random.normal(k3, shape2, dtype=jnp.float32)
    target2 = (jax.random.uniform(k4, shape2) > 0.5).astype(jnp.float32)
    loss2 = adversarial_loss(logits2, target2)
    jax.block_until_ready(loss2)
    ref2 = _reference(logits2, target2)
    assert jnp.allclose(loss2, ref2, atol=1e-5, rtol=1e-5), (loss2, ref2)

    # 4) Multi-step grid + (8, lane) sublane-group accumulator
    #    (small block cap forces n_steps > 1 while staying zero-copy).
    shape3 = (2, 4, 64, 64)
    logits3 = jax.random.normal(k5, shape3, dtype=jnp.float32)
    loss3 = adversarial_loss(logits3, 0.0, max_block_bytes=64 << 10)
    jax.block_until_ready(loss3)
    ref3 = _reference(logits3, jnp.zeros_like(logits3))
    assert jnp.allclose(loss3, ref3, atol=1e-5, rtol=1e-5), (loss3, ref3)

    print("KERNEL_OK")
</pallas_src>

<mosaic_0001>
module attributes {stable_mosaic.version = 11 : i64} {
  func.func @kernel(%arg0: i32, %arg1: memref<4x512xf32, #tpu.memory_space<vmem>>, %arg2: memref<4x512xf32, #tpu.memory_space<vmem>>, %arg3: memref<4x512xf32, #tpu.memory_space<vmem>>) attributes {dimension_semantics = [#tpu.dimension_semantics<arbitrary>], iteration_bounds = array<i64: 1>, scalar_prefetch = 0 : i64, scratch_operands = 0 : i64, tpu.core_type = #tpu.core_type<tc>, window_params = [{transform_indices = @transform_0, window_bounds = array<i64: 4, 512>}, {transform_indices = @transform_1, window_bounds = array<i64: 4, 512>}, {pipeline_mode = #tpu.pipeline_mode<synchronous>, transform_indices = @transform_2, window_bounds = array<i64: 4, 512>}]} {
    %c0 = arith.constant 0 : index
    %c0_0 = arith.constant 0 : index
    %0 = vector.load %arg1[%c0, %c0_0] : memref<4x512xf32, #tpu.memory_space<vmem>>, vector<4x512xf32>
    %c0_1 = arith.constant 0 : index
    %c0_2 = arith.constant 0 : index
    %1 = vector.load %arg2[%c0_1, %c0_2] : memref<4x512xf32, #tpu.memory_space<vmem>>, vector<4x512xf32>
    %cst = arith.constant 0.000000e+00 : f32
    %2 = vector.broadcast %cst : f32 to vector<4x512xf32>
    %3 = arith.maximumf %0, %2 : vector<4x512xf32>
    %4 = arith.mulf %0, %1 : vector<4x512xf32>
    %5 = arith.subf %3, %4 : vector<4x512xf32>
    %6 = math.absf %0 : vector<4x512xf32>
    %cst_3 = arith.constant 0.000000e+00 : f32
    %7 = vector.broadcast %cst_3 : f32 to vector<4x512xf32>
    %8 = arith.subf %7, %6 : vector<4x512xf32>
    %9 = math.exp %8 : vector<4x512xf32>
    %10 = math.log1p %9 : vector<4x512xf32>
    %11 = arith.addf %5, %10 : vector<4x512xf32>
    %c0_i32 = arith.constant 0 : i32
    %12 = arith.cmpi eq, %arg0, %c0_i32 : i32
    %13 = arith.extui %12 : i1 to i32
    %c0_i32_4 = arith.constant 0 : i32
    %14 = arith.cmpi ne, %13, %c0_i32_4 : i32
    scf.if %14 {
      %cst_9 = arith.constant 0.000000e+00 : f32
      %18 = vector.broadcast %cst_9 : f32 to vector<4x512xf32>
      %c0_10 = arith.constant 0 : index
      %c0_11 = arith.constant 0 : index
      %19 = vector.load %arg3[%c0_10, %c0_11] : memref<4x512xf32, #tpu.memory_space<vmem>>, vector<4x512xf32>
      tpu.vector_store %arg3[%c0_10, %c0_11], %18 {strides = array<i32>} : memref<4x512xf32, #tpu.memory_space<vmem>>, vector<4x512xf32>,
    } else {
    }
    %c0_5 = arith.constant 0 : index
    %c0_6 = arith.constant 0 : index
    %15 = vector.load %arg3[%c0_5, %c0_6] : memref<4x512xf32, #tpu.memory_space<vmem>>, vector<4x512xf32>
    %16 = arith.addf %15, %11 : vector<4x512xf32>
    %c0_7 = arith.constant 0 : index
    %c0_8 = arith.constant 0 : index
    %17 = vector.load %arg3[%c0_7, %c0_8] : memref<4x512xf32, #tpu.memory_space<vmem>>, vector<4x512xf32>
    tpu.vector_store %arg3[%c0_7, %c0_8], %16 {strides = array<i32>} : memref<4x512xf32, #tpu.memory_space<vmem>>, vector<4x512xf32>,
    return
  }
  func.func @transform_0(%arg0: i32) -> (i32, i32) {
    %c0_i32 = arith.constant 0 : i32
    %c0_i32_0 = arith.constant 0 : i32
    return %arg0, %c0_i32 : i32, i32
  }
  func.func @transform_1(%arg0: i32) -> (i32, i32) {
    %c0_i32 = arith.constant 0 : i32
    %c0_i32_0 = arith.constant 0 : i32
    return %arg0, %c0_i32 : i32, i32
  }
  func.func @transform_2(%arg0: i32) -> (i32, i32) {
    %c0_i32 = arith.constant 0 : i32
    %c0_i32_0 = arith.constant 0 : i32
    %c0_i32_1 = arith.constant 0 : i32
    return %c0_i32, %c0_i32_0 : i32, i32
  }
}

</mosaic_0001>

<llo_original>
// kernel: tpu_custom_call.1
$region0: #{tpu_custom_call.1}
  #allocation0 [shape = 'u32[]', space=smem, size = 0x4, offset = 0x4, fixed_abs, tag = 'smem constant byte address 0x4 - core index']
  #allocation1 [shape = 'u32[144,128]{1,0:T(1,128)}', space=vmem, size = 0x12000, scoped, tag = 'internal scratch']
  %s0 = inlined_call_operand.hbm [shape: f32[4,512], index: 0, kind: input, shape index: {}]
  %s1 = inlined_call_operand.hbm [shape: f32[4,512], index: 1, kind: input, shape index: {}]
  %s2 = inlined_call_operand.hbm [shape: f32[4,512], index: 2, kind: output, shape index: {}]
  %s3 = sld [smem:[#allocation0]]
  $region30: #{tpu_custom_call.1} parent=0
    _
  %s5 = ssub.s32 1, %s3
  %s6 = scalar_select 0, %s5, %s3
  $region1: #{tpu_custom_call.1} parent=0
    #allocation2 [shape = 'u8[8192]{0}', space=vmem, size = 0x2000, scoped, tag = 'input window, operand 0, single buffered']
    #allocation3 [shape = 's32[1]{0}', space=sflag, size = 0x4, scoped, tag = 'scoped memory for tpu_custom_call.1']
    #allocation4 [shape = 's32[1]{0}', space=sflag, size = 0x4, scoped, tag = 'scoped memory for tpu_custom_call.1']
    #allocation5 [shape = 'u8[8192]{0}', space=vmem, size = 0x2000, scoped, tag = 'input window, operand 1, single buffered']
    #allocation6 [shape = 's32[1]{0}', space=sflag, size = 0x4, scoped, tag = 'scoped memory for tpu_custom_call.1']
    #allocation7 [shape = 'u8[8192]{0}', space=vmem, size = 0x2000, scoped, tag = 'output window, operand 0, single buffered']
    %7 = vsyncpa [#allocation3], 0
    %8 = vsyncpa [#allocation6], 0
    %9 = vsyncpa [#allocation4], 0
    // Predicated region
    $region2: #{tpu_custom_call.1} parent=1 // pred_check
      _
    $region3: #{tpu_custom_call.1} parent=1 // pred_check_branch
      %11 = sbr.rel (0) target = $region5
    $region4: #{tpu_custom_call.1} parent=1 // pred_region
      %s13 = ssub.s32 256, 256
      %14 = vsyncadd [#allocation3], %s13
      %s16 = sshll.u32 [#allocation2], 4
      %s17 = int_to_ptr.vmem [resolvable:$true] %s16
      %19 = dma.hbm_to_vmem [thread:$0]  %s0, 256, %s17, [#allocation3]
    $region5: #{tpu_custom_call.1} parent=1 // pred_fallthru
      _
    // Predicated region
    $region6: #{tpu_custom_call.1} parent=1 // pred_check
      _
    $region7: #{tpu_custom_call.1} parent=1 // pred_check_branch
      %21 = sbr.rel (0) target = $region9
    $region8: #{tpu_custom_call.1} parent=1 // pred_region
      %s23 = ssub.s32 256, 256
      %24 = vsyncadd [#allocation6], %s23
      %s26 = sshll.u32 [#allocation5], 4
      %s27 = int_to_ptr.vmem [resolvable:$true] %s26
      %29 = dma.hbm_to_vmem [thread:$0]  %s1, 256, %s27, [#allocation6]
    $region9: #{tpu_custom_call.1} parent=1 // pred_fallthru
      _
    // Predicated region
    $region10: #{tpu_custom_call.1} parent=1 // pred_check
      _
    $region11: #{tpu_custom_call.1} parent=1 // pred_check_branch
      %31 = sbr.rel (0) target = $region13
    $region12: #{tpu_custom_call.1} parent=1 // pred_region
      %32 = dma.done [#allocation3], 256
    $region13: #{tpu_custom_call.1} parent=1 // pred_fallthru
      _
    // Predicated region
    $region14: #{tpu_custom_call.1} parent=1 // pred_check
      _
    $region15: #{tpu_custom_call.1} parent=1 // pred_check_branch
      %34 = sbr.rel (0) target = $region17
    $region16: #{tpu_custom_call.1} parent=1 // pred_region
      %35 = dma.done [#allocation6], 256
    $region17: #{tpu_custom_call.1} parent=1 // pred_fallthru
      _
    %v36 = vld [vmem:[#allocation2] sm:$0xff]
    %v37 = vld [vmem:[#allocation2 + $0x8] sm:$0xff]
    %v38 = vld [vmem:[#allocation5] sm:$0xff]
    %v39 = vld [vmem:[#allocation5 + $0x8] sm:$0xff]
    %v40 = vmax.f32 %v36, 0.0
    %v41 = vmax.f32 %v37, 0.0
    %v42 = vmul.f32 %v36, %v38
    %v43 = vmul.f32 %v37, %v39
    %v44 = vsub.f32 %v40, %v42
    %v45 = vsub.f32 %v41, %v43
    %v46 = vand.u32 2147483647, %v36
    %v47 = vand.u32 2147483647, %v37
    %v48 = vsub.f32 0.0, %v46
    %v49 = vsub.f32 0.0, %v47
    %v50 = vmul.f32 %v48, 1.442695
    %v51 = vpow.pop %v50
    %v52 = vmul.f32 %v49, 1.442695
    %v53 = vpow.pop %v52
    %v54 = vadd.f32 %v51, 1.0
    %v55 = vlog2.pop %v54
    %v56 = vmul.f32 %v55, 0.6931472
    %v57 = vmul.f32 -0.5, %v51
    %v58 = vadd.f32 %v57, 1.0
    %v59 = vmul.f32 %v58, %v51
    %v60 = vand.u32 2147483647, %v51
    %vm61 = vcmp.lt.f32.partialorder %v60, 0.0004427343
    %v62 = vsel %vm61, %v59, %v56
    %v63 = vadd.f32 %v53, 1.0
    %v64 = vlog2.pop %v63
    %v65 = vmul.f32 %v64, 0.6931472
    %v66 = vmul.f32 -0.5, %v53
    %v67 = vadd.f32 %v66, 1.0
    %v68 = vmul.f32 %v67, %v53
    %v69 = vand.u32 2147483647, %v53
    %vm70 = vcmp.lt.f32.partialorder %v69, 0.0004427343
    %v71 = vsel %vm70, %v68, %v65
    %v72 = vadd.f32 %v44, %v62
    %v73 = vadd.f32 %v45, %v71
    %p74 = scmp.eq.s32.totalorder 0, 0
    // Predicated region
    $region18: #{tpu_custom_call.1} parent=1 // pred_check
      %p75 = pneg %p74
    $region19: #{tpu_custom_call.1} parent=1 // pred_check_branch
      %77 = sbr.rel (%p75) target = $region21
    $region20: #{tpu_custom_call.1} parent=1 // pred_region
      %78 = vst [vmem:[#allocation7] sm:$0xff] 0.0
      %79 = vst [vmem:[#allocation7 + $0x8] sm:$0xff] 0.0
    $region21: #{tpu_custom_call.1} parent=1 // pred_fallthru
      _
    %v80 = vld [vmem:[#allocation7] sm:$0xff]
    %v81 = vld [vmem:[#allocation7 + $0x8] sm:$0xff]
    %v82 = vadd.f32 %v80, %v72
    %v83 = vadd.f32 %v81, %v73
    %84 = vst [vmem:[#allocation7] sm:$0xff] %v82
    %85 = vst [vmem:[#allocation7 + $0x8] sm:$0xff] %v83
    // Predicated region
    $region22: #{tpu_custom_call.1} parent=1 // pred_check
      _
    $region23: #{tpu_custom_call.1} parent=1 // pred_check_branch
      %87 = sbr.rel (0) target = $region25
    $region24: #{tpu_custom_call.1} parent=1 // pred_region
      %s89 = ssub.s32 256, 256
      %90 = vsyncadd [#allocation4], %s89
      %s92 = sshll.u32 [#allocation7], 4
      %s93 = int_to_ptr.vmem [resolvable:$true] %s92
      %95 = dma.vmem_to_hbm [thread:$0]  %s93, 256, %s2, [#allocation4]
    $region25: #{tpu_custom_call.1} parent=1 // pred_fallthru
      _
    // Predicated region
    $region26: #{tpu_custom_call.1} parent=1 // pred_check
      _
    $region27: #{tpu_custom_call.1} parent=1 // pred_check_branch
      %97 = sbr.rel (0) target = $region29
    $region28: #{tpu_custom_call.1} parent=1 // pred_region
      %98 = dma.done [#allocation4], 256
    $region29: #{tpu_custom_call.1} parent=1 // pred_fallthru
      _
    %99 = vsyncpa [#allocation3], 1
    %100 = vsyncpa [#allocation6], 1
    %101 = vsyncpa [#allocation4], 1

</llo_original>
